<compile_context>
chip_gen: v6e
topology: v6e:2x2x1
jax: 0.10.0
libtpu: 0.0.40
codegen_flags: <defaults>
</compile_context>

<pallas_src>
import numpy as np
import jax
import jax.numpy as jnp
from jax.experimental import pallas as pl
from jax.experimental.pallas import tpu as pltpu


TB_MAX = 2048  # review: raise the batch-tile cap well above 512 (sweepable)


def _make_kernel(preds, actions, k_dim):
    P, A, K = preds, actions, k_dim
    PK = P * K

    def kernel(x_ref, w_ref, b_ref, scale_ref, offset_ref,
               s1_ref, rep_ref, s2_ref, out_ref):
        # x_ref:     (A + P*A, TB)  rows [0:A]=q^T, rows [A:]=pred_q^T (batch on lanes)
        # w_ref:     (2*P*K, A+P*A) fused [tiled query proj ; block-diag key proj] weight
        # b_ref:     (2*P*K, 1)     fused bias column (query bias already scaled)
        # scale/offset_ref: (P*A, 1) affine value params
        # s1_ref:    (P, P*K)       block-of-ones selector (score reduction over k)
        # rep_ref:   (P*A, P)       replication selector (broadcast attn over actions)
        # s2_ref:    (A, P*A)       stacked-identity selector (value sum over preds)
        x = x_ref[...]

        # One fused MXU matmul: rows [0:P*K] = scaled query projection tiled P
        # times, rows [P*K:] = key projection of every prediction.
        proj = jnp.dot(w_ref[...], x,
                       preferred_element_type=jnp.float32) + b_ref[...]
        qrep = proj[:PK, :]                                     # (P*K, TB)
        keys = proj[PK:, :]                                     # (P*K, TB)

        # scores[p, b] = sum_k queries[b, k] * keys[b, p, k]   (selector matmul)
        scores = jnp.dot(s1_ref[...], qrep * keys,
                         preferred_element_type=jnp.float32)    # (P, TB)

        # softmax over predictions (sublanes); every lane is one batch row.
        m = jnp.max(scores, axis=0, keepdims=True)
        e = jnp.exp(scores - m)
        attn = e * pl.reciprocal(jnp.sum(e, axis=0, keepdims=True),
                                 approx=False)                  # (P, TB)

        # affine values + attention-weighted sum over predictions.
        vals = x[A:, :] * scale_ref[...] + offset_ref[...]      # (P*A, TB)
        attn_rep = jnp.dot(rep_ref[...], attn,
                           preferred_element_type=jnp.float32)  # (P*A, TB)
        outv = jnp.dot(s2_ref[...], attn_rep * vals,
                       preferred_element_type=jnp.float32)      # (A, TB)

        # Single fused, lane-dense output slab: [output^T ; attn^T].
        out_ref[...] = jnp.concatenate([outv, attn], axis=0)    # (A + P, TB)

    return kernel


def pack_params(params, preds, actions, k_dim):
    """Build fused weight/bias and selector constants ONCE (hoisted out of the call path)."""
    P, A, K = preds, actions, k_dim
    f32 = jnp.float32
    scaling = float(K) ** -0.5
    wq = params["wq"].astype(f32)                # (A, K)  stored as (in, out)
    wk = params["wk"].astype(f32)                # (A, K)
    bq = params["bq"].reshape(K).astype(f32)
    bk = params["bk"].reshape(K).astype(f32)

    # Fused projection weight (2*P*K, A + P*A):
    #   row p*K + k       , col a            -> scaling * wq[a, k]   (tiled over p)
    #   row P*K + p*K + k , col A + p*A + a  -> wk[a, k]             (block diagonal)
    wq_t = (wq * scaling).T                                               # (K, A)
    top = jnp.concatenate([jnp.tile(wq_t, (P, 1)),
                           jnp.zeros((P * K, P * A), f32)], axis=1)
    eye_p = jnp.eye(P, dtype=f32)
    wk_blk = (eye_p[:, None, :, None] * wk.T[None, :, None, :]
              ).reshape(P * K, P * A)
    bottom = jnp.concatenate([jnp.zeros((P * K, A), f32), wk_blk], axis=1)
    w_fused = jnp.concatenate([top, bottom], axis=0)                      # (2PK, A+PA)
    b_fused = jnp.concatenate(
        [jnp.tile((bq * scaling).reshape(K, 1), (P, 1)),
         jnp.tile(bk.reshape(K, 1), (P, 1))], axis=0)                     # (2PK, 1)

    # Affine value parameters as column vectors aligned with pred_q^T rows.
    scale_col = params["scale"].reshape(P * A, 1).astype(f32)
    offset_col = params["offset"].reshape(P * A, 1).astype(f32)

    # Constant 0/1 selector matrices (keep the reductions on the idle MXU).
    s1 = jnp.kron(eye_p, jnp.ones((1, K), f32))                           # (P, P*K)
    rep = jnp.kron(eye_p, jnp.ones((A, 1), f32))                          # (P*A, P)
    s2 = jnp.tile(jnp.eye(A, dtype=f32), (1, P))                          # (A, P*A)

    return {"w": w_fused, "b": b_fused, "scale": scale_col,
            "offset": offset_col, "s1": s1, "rep": rep, "s2": s2}


def _pick_tb(batch, tb):
    """Batch-tile (lane) width: full batch, or a multiple of 128 with >=2 grid steps."""
    if tb is not None:
        tb = int(tb)
        if tb >= batch:
            return batch
        tb = max(128, (tb // 128) * 128)     # lane tiles must be multiples of 128
        return batch if tb >= batch else tb
    if batch <= 128:
        return batch                          # single full-extent block
    n_steps = max(2, pl.cdiv(batch, TB_MAX))  # >=2: shard over both v7x TensorCores
    per = pl.cdiv(batch, n_steps)
    return min(TB_MAX, ((per + 127) // 128) * 128)


def attention_policy_distillation(context, q, pred_q, params, k_dim,
                                  tb=None, packed=None):
    """Pallas-TPU forward. Returns (output (B,1,A), attn_weights (B,1,P))."""
    del context  # unused by the 'lin_action_independent' mechanism
    B, A = q.shape
    P = pred_q.shape[1]
    K = k_dim
    if packed is None:
        packed = pack_params(params, P, A, K)  # hoist/cache in real use (see __main__)

    # Layout plumbing (batch -> lanes): one fused input slab [q^T ; pred_q^T].
    x = jnp.concatenate(
        [q.T.astype(jnp.float32),
         jnp.transpose(pred_q, (1, 2, 0)).reshape(P * A, B).astype(jnp.float32)],
        axis=0)                                                          # (A+P*A, B)

    tb = _pick_tb(B, tb)
    grid = (pl.cdiv(B, tb),)  # ragged final tile: implicit OOB masking, no jnp.pad

    fused = pl.pallas_call(
        _make_kernel(P, A, K),
        grid=grid,
        in_specs=[
            pl.BlockSpec((A + P * A, tb), lambda i: (0, i)),         # [q; pred_q]^T
            pl.BlockSpec((2 * P * K, A + P * A), lambda i: (0, 0)),  # fused weight
            pl.BlockSpec((2 * P * K, 1), lambda i: (0, 0)),          # fused bias
            pl.BlockSpec((P * A, 1), lambda i: (0, 0)),              # scale
            pl.BlockSpec((P * A, 1), lambda i: (0, 0)),              # offset
            pl.BlockSpec((P, P * K), lambda i: (0, 0)),              # S1 selector
            pl.BlockSpec((P * A, P), lambda i: (0, 0)),              # Rep selector
            pl.BlockSpec((A, P * A), lambda i: (0, 0)),              # S2 selector
        ],
        out_specs=pl.BlockSpec((A + P, tb), lambda i: (0, i)),
        out_shape=jax.ShapeDtypeStruct((A + P, B), jnp.float32),
        compiler_params=pltpu.CompilerParams(
            dimension_semantics=("parallel",),
            vmem_limit_bytes=32 * 1024 * 1024),
    )(x, packed["w"], packed["b"], packed["scale"], packed["offset"],
      packed["s1"], packed["rep"], packed["s2"])

    out = fused[:A, :].T.reshape(B, 1, A)
    attn = fused[A:, :].T.reshape(B, 1, P)
    return out, attn


def _reference(context, q, pred_q, params, k_dim):
    """Pure-JAX reference of the PyTorch forward (same mechanism/flags).

    Contractions are written as explicit broadcast-multiply + sum so the
    reference is exact float32, independent of XLA's default TPU matmul path.
    """
    del context
    scaling = float(k_dim) ** -0.5
    queries = (jnp.sum(q[:, :, None] * params["wq"][None, :, :], axis=1)
               + params["bq"]) * scaling                                   # (B, K)
    keys = (jnp.sum(pred_q[:, :, :, None] * params["wk"][None, None, :, :], axis=2)
            + params["bk"].reshape(1, 1, -1))                              # (B, P, K)
    v = pred_q * params["scale"][None] + params["offset"][None]            # (B, P, A)
    scores = jnp.sum(queries[:, None, :] * keys, axis=-1)                  # (B, P)
    attn = jax.nn.softmax(scores, axis=-1)
    out = jnp.sum(attn[:, :, None] * v, axis=1)                            # (B, A)
    return out[:, None, :], attn[:, None, :]


def init_params(key, c_dim, actions, k_dim, preds):
    """Deterministic xavier-uniform-ish init; linear weights stored as (in, out)."""
    k1, k2, k3, k4 = jax.random.split(key, 4)

    def xavier(k, fan_in, fan_out):
        bound = np.sqrt(6.0 / (fan_in + fan_out))
        return jax.random.uniform(k, (fan_in, fan_out), jnp.float32, -bound, bound)

    def bias(k, fan_in, fan_out):
        bound = 1.0 / np.sqrt(fan_in)
        return jax.random.uniform(k, (1, fan_out), jnp.float32, -bound, bound)

    return {
        "wq": xavier(k1, actions, k_dim),
        "bq": bias(k2, actions, k_dim),
        "wk": xavier(k3, actions, k_dim),
        "bk": bias(k4, actions, k_dim),
        # affine=True parameters: scale=ones, offset=zeros (preds, v_dim=actions)
        "scale": jnp.ones((preds, actions), jnp.float32),
        "offset": jnp.zeros((preds, actions), jnp.float32),
        # TODO(synk): demon_scale_mean/std & target_scale_mean/std are no-ops
        # when standardize=False, so they are not materialized here.
    }


if __name__ == "__main__":
    B, C_DIM, ACTIONS, PREDS, K_DIM = 2, 16, 8, 8, 32

    key = jax.random.PRNGKey(0)
    kc, kq, kp, kw = jax.random.split(key, 4)
    context = jax.random.normal(kc, (B, C_DIM), jnp.float32)   # unused by mechanism
    q = jax.random.normal(kq, (B, ACTIONS), jnp.float32)
    pred_q = jax.random.normal(kp, (B, PREDS, ACTIONS), jnp.float32)
    params = init_params(kw, C_DIM, ACTIONS, K_DIM, PREDS)
    packed = pack_params(params, PREDS, ACTIONS, K_DIM)        # hoisted: built once

    out, attn = attention_policy_distillation(context, q, pred_q, params, K_DIM,
                                               packed=packed)
    out = jax.block_until_ready(out)
    attn = jax.block_until_ready(attn)

    # Tolerance covers the MXU's multi-pass float32 matmul path vs the exact
    # float32 reference (actual error is far smaller).
    out_ref, attn_ref = _reference(context, q, pred_q, params, K_DIM)
    np.testing.assert_allclose(np.asarray(out), np.asarray(out_ref),
                               rtol=1e-3, atol=1e-3)
    np.testing.assert_allclose(np.asarray(attn), np.asarray(attn_ref),
                               rtol=1e-3, atol=1e-3)

    # Second check: multi-step grid (two 256-lane batch tiles, the second ragged)
    # -- exercises the pad-free OOB-masked path and the >=2-step (v7x) sharding.
    B2 = 300
    kq2, kp2 = jax.random.split(jax.random.PRNGKey(1), 2)
    q2 = jax.random.normal(kq2, (B2, ACTIONS), jnp.float32)
    pred_q2 = jax.random.normal(kp2, (B2, PREDS, ACTIONS), jnp.float32)
    ctx2 = jnp.zeros((B2, C_DIM), jnp.float32)
    out2, attn2 = attention_policy_distillation(ctx2, q2, pred_q2, params, K_DIM,
                                                packed=packed)
    out2 = jax.block_until_ready(out2)
    attn2 = jax.block_until_ready(attn2)
    out2_ref, attn2_ref = _reference(ctx2, q2, pred_q2, params, K_DIM)
    np.testing.assert_allclose(np.asarray(out2), np.asarray(out2_ref),
                               rtol=1e-3, atol=1e-3)
    np.testing.assert_allclose(np.asarray(attn2), np.asarray(attn2_ref),
                               rtol=1e-3, atol=1e-3)

    print("KERNEL_OK")
</pallas_src>

<mosaic_0001>
module attributes {stable_mosaic.version = 11 : i64} {
  func.func @kernel(%arg0: i32, %arg1: memref<72x2xf32, #tpu.memory_space<vmem>>, %arg2: memref<512x72xf32, #tpu.memory_space<vmem>>, %arg3: memref<512x1xf32, #tpu.memory_space<vmem>>, %arg4: memref<64x1xf32, #tpu.memory_space<vmem>>, %arg5: memref<64x1xf32, #tpu.memory_space<vmem>>, %arg6: memref<8x256xf32, #tpu.memory_space<vmem>>, %arg7: memref<64x8xf32, #tpu.memory_space<vmem>>, %arg8: memref<8x64xf32, #tpu.memory_space<vmem>>, %arg9: memref<16x2xf32, #tpu.memory_space<vmem>>) attributes {dimension_semantics = [#tpu.dimension_semantics<parallel>], iteration_bounds = array<i64: 1>, scalar_prefetch = 0 : i64, scratch_operands = 0 : i64, tpu.core_type = #tpu.core_type<tc>, window_params = [{transform_indices = @transform_0, window_bounds = array<i64: 72, 2>}, {pipeline_mode = #tpu.pipeline_mode<synchronous>, transform_indices = @transform_1, window_bounds = array<i64: 512, 72>}, {pipeline_mode = #tpu.pipeline_mode<synchronous>, transform_indices = @transform_2, window_bounds = array<i64: 512, 1>}, {pipeline_mode = #tpu.pipeline_mode<synchronous>, transform_indices = @transform_3, window_bounds = array<i64: 64, 1>}, {pipeline_mode = #tpu.pipeline_mode<synchronous>, transform_indices = @transform_4, window_bounds = array<i64: 64, 1>}, {pipeline_mode = #tpu.pipeline_mode<synchronous>, transform_indices = @transform_5, window_bounds = array<i64: 8, 256>}, {pipeline_mode = #tpu.pipeline_mode<synchronous>, transform_indices = @transform_6, window_bounds = array<i64: 64, 8>}, {pipeline_mode = #tpu.pipeline_mode<synchronous>, transform_indices = @transform_7, window_bounds = array<i64: 8, 64>}, {transform_indices = @transform_8, window_bounds = array<i64: 16, 2>}]} {
    %c0 = arith.constant 0 : index
    %c0_0 = arith.constant 0 : index
    %0 = vector.load %arg1[%c0, %c0_0] : memref<72x2xf32, #tpu.memory_space<vmem>>, vector<72x2xf32>
    %c0_1 = arith.constant 0 : index
    %c0_2 = arith.constant 0 : index
    %1 = vector.load %arg2[%c0_1, %c0_2] : memref<512x72xf32, #tpu.memory_space<vmem>>, vector<512x72xf32>
    %cst = arith.constant dense<0.000000e+00> : vector<512x2xf32>
    %2 = tpu.matmul %1, %0, %cst {dimension_numbers = #tpu.dot_dimension_numbers<[1], [0], [0], [1], [0, 0, 1, 1], [], []>} : vector<512x72xf32>, vector<72x2xf32>, vector<512x2xf32> -> vector<512x2xf32>
    %c0_3 = arith.constant 0 : index
    %c0_4 = arith.constant 0 : index
    %3 = vector.load %arg3[%c0_3, %c0_4] : memref<512x1xf32, #tpu.memory_space<vmem>>, vector<512x1xf32>
    %4 = vector.broadcast %3 : vector<512x1xf32> to vector<512x2xf32>
    %5 = arith.addf %2, %4 : vector<512x2xf32>
    %6 = vector.extract_strided_slice %5 {offsets = [0, 0], sizes = [256, 2], strides = [1, 1]} : vector<512x2xf32> to vector<256x2xf32>
    %7 = vector.extract_strided_slice %5 {offsets = [256, 0], sizes = [256, 2], strides = [1, 1]} : vector<512x2xf32> to vector<256x2xf32>
    %c0_5 = arith.constant 0 : index
    %c0_6 = arith.constant 0 : index
    %8 = vector.load %arg6[%c0_5, %c0_6] : memref<8x256xf32, #tpu.memory_space<vmem>>, vector<8x256xf32>
    %9 = arith.mulf %6, %7 : vector<256x2xf32>
    %cst_7 = arith.constant dense<0.000000e+00> : vector<8x2xf32>
    %10 = tpu.matmul %8, %9, %cst_7 {dimension_numbers = #tpu.dot_dimension_numbers<[1], [0], [0], [1], [0, 0, 1, 1], [], []>} : vector<8x256xf32>, vector<256x2xf32>, vector<8x2xf32> -> vector<8x2xf32>
    %cst_8 = arith.constant dense<0xFF800000> : vector<2xf32>
    %11 = vector.multi_reduction <maximumf>, %10, %cst_8 [0] : vector<8x2xf32> to vector<2xf32>
    %12 = vector.shape_cast %11 : vector<2xf32> to vector<1x2xf32>
    %13 = vector.broadcast %12 : vector<1x2xf32> to vector<8x2xf32>
    %14 = arith.subf %10, %13 : vector<8x2xf32>
    %15 = math.exp %14 : vector<8x2xf32>
    %cst_9 = arith.constant dense<0.000000e+00> : vector<2xf32>
    %16 = vector.multi_reduction <add>, %15, %cst_9 [0] : vector<8x2xf32> to vector<2xf32>
    %17 = vector.shape_cast %16 : vector<2xf32> to vector<1x2xf32>
    %18 = tpu.reciprocal %17 : vector<1x2xf32> -> vector<1x2xf32>
    %19 = vector.broadcast %18 : vector<1x2xf32> to vector<8x2xf32>
    %20 = arith.mulf %15, %19 : vector<8x2xf32>
    %21 = vector.extract_strided_slice %0 {offsets = [8, 0], sizes = [64, 2], strides = [1, 1]} : vector<72x2xf32> to vector<64x2xf32>
    %c0_10 = arith.constant 0 : index
    %c0_11 = arith.constant 0 : index
    %22 = vector.load %arg4[%c0_10, %c0_11] : memref<64x1xf32, #tpu.memory_space<vmem>>, vector<64x1xf32>
    %23 = vector.broadcast %22 : vector<64x1xf32> to vector<64x2xf32>
    %24 = arith.mulf %21, %23 : vector<64x2xf32>
    %c0_12 = arith.constant 0 : index
    %c0_13 = arith.constant 0 : index
    %25 = vector.load %arg5[%c0_12, %c0_13] : memref<64x1xf32, #tpu.memory_space<vmem>>, vector<64x1xf32>
    %26 = vector.broadcast %25 : vector<64x1xf32> to vector<64x2xf32>
    %27 = arith.addf %24, %26 : vector<64x2xf32>
    %c0_14 = arith.constant 0 : index
    %c0_15 = arith.constant 0 : index
    %28 = vector.load %arg7[%c0_14, %c0_15] : memref<64x8xf32, #tpu.memory_space<vmem>>, vector<64x8xf32>
    %cst_16 = arith.constant dense<0.000000e+00> : vector<64x2xf32>
    %29 = tpu.matmul %28, %20, %cst_16 {dimension_numbers = #tpu.dot_dimension_numbers<[1], [0], [0], [1], [0, 0, 1, 1], [], []>} : vector<64x8xf32>, vector<8x2xf32>, vector<64x2xf32> -> vector<64x2xf32>
    %c0_17 = arith.constant 0 : index
    %c0_18 = arith.constant 0 : index
    %30 = vector.load %arg8[%c0_17, %c0_18] : memref<8x64xf32, #tpu.memory_space<vmem>>, vector<8x64xf32>
    %31 = arith.mulf %29, %27 : vector<64x2xf32>
    %cst_19 = arith.constant dense<0.000000e+00> : vector<8x2xf32>
    %32 = tpu.matmul %30, %31, %cst_19 {dimension_numbers = #tpu.dot_dimension_numbers<[1], [0], [0], [1], [0, 0, 1, 1], [], []>} : vector<8x64xf32>, vector<64x2xf32>, vector<8x2xf32> -> vector<8x2xf32>
    %33 = tpu.concatenate %32, %20 in 0 : vector<8x2xf32>, vector<8x2xf32> -> vector<16x2xf32>
    %c0_20 = arith.constant 0 : index
    %c0_21 = arith.constant 0 : index
    %34 = vector.load %arg9[%c0_20, %c0_21] : memref<16x2xf32, #tpu.memory_space<vmem>>, vector<16x2xf32>
    tpu.vector_store %arg9[%c0_20, %c0_21], %33 {strides = array<i32>} : memref<16x2xf32, #tpu.memory_space<vmem>>, vector<16x2xf32>,
    return
  }
  func.func @transform_0(%arg0: i32) -> (i32, i32) {
    %c0_i32 = arith.constant 0 : i32
    %c0_i32_0 = arith.constant 0 : i32
    return %c0_i32, %arg0 : i32, i32
  }
  func.func @transform_1(%arg0: i32) -> (i32, i32) {
    %c0_i32 = arith.constant 0 : i32
    %c0_i32_0 = arith.constant 0 : i32
    %c0_i32_1 = arith.constant 0 : i32
    return %c0_i32, %c0_i32_0 : i32, i32
  }
  func.func @transform_2(%arg0: i32) -> (i32, i32) {
    %c0_i32 = arith.constant 0 : i32
    %c0_i32_0 = arith.constant 0 : i32
    %c0_i32_1 = arith.constant 0 : i32
    return %c0_i32, %c0_i32_0 : i32, i32
  }
  func.func @transform_3(%arg0: i32) -> (i32, i32) {
    %c0_i32 = arith.constant 0 : i32
    %c0_i32_0 = arith.constant 0 : i32
    %c0_i32_1 = arith.constant 0 : i32
    return %c0_i32, %c0_i32_0 : i32, i32
  }
  func.func @transform_4(%arg0: i32) -> (i32, i32) {
    %c0_i32 = arith.constant 0 : i32
    %c0_i32_0 = arith.constant 0 : i32
    %c0_i32_1 = arith.constant 0 : i32
    return %c0_i32, %c0_i32_0 : i32, i32
  }
  func.func @transform_5(%arg0: i32) -> (i32, i32) {
    %c0_i32 = arith.constant 0 : i32
    %c0_i32_0 = arith.constant 0 : i32
    %c0_i32_1 = arith.constant 0 : i32
    return %c0_i32, %c0_i32_0 : i32, i32
  }
  func.func @transform_6(%arg0: i32) -> (i32, i32) {
    %c0_i32 = arith.constant 0 : i32
    %c0_i32_0 = arith.constant 0 : i32
    %c0_i32_1 = arith.constant 0 : i32
    return %c0_i32, %c0_i32_0 : i32, i32
  }
  func.func @transform_7(%arg0: i32) -> (i32, i32) {
    %c0_i32 = arith.constant 0 : i32
    %c0_i32_0 = arith.constant 0 : i32
    %c0_i32_1 = arith.constant 0 : i32
    return %c0_i32, %c0_i32_0 : i32, i32
  }
  func.func @transform_8(%arg0: i32) -> (i32, i32) {
    %c0_i32 = arith.constant 0 : i32
    %c0_i32_0 = arith.constant 0 : i32
    return %c0_i32, %arg0 : i32, i32
  }
}

</mosaic_0001>

<llo_original>
// kernel: tpu_custom_call.1
$region0: #{tpu_custom_call.1}
  #allocation0 [shape = 'u32[]', space=smem, size = 0x4, offset = 0x4, fixed_abs, tag = 'smem constant byte address 0x4 - core index']
  #allocation1 [shape = 'u32[144,128]{1,0:T(1,128)}', space=vmem, size = 0x12000, scoped, tag = 'internal scratch']
  %s0 = inlined_call_operand.vmem [shape: f32[72,2], index: 0, kind: input, shape index: {}]
  %s1 = inlined_call_operand.vmem [shape: f32[512,72], index: 1, kind: input, shape index: {}]
  %s2 = inlined_call_operand.vmem [shape: f32[512,1], index: 2, kind: input, shape index: {}]
  %s3 = inlined_call_operand.vmem [shape: f32[64,1], index: 3, kind: input, shape index: {}]
  %s4 = inlined_call_operand.vmem [shape: f32[64,1], index: 4, kind: input, shape index: {}]
  %s5 = inlined_call_operand.vmem [shape: f32[8,256], index: 5, kind: input, shape index: {}]
  %s6 = inlined_call_operand.vmem [shape: f32[64,8], index: 6, kind: input, shape index: {}]
  %s7 = inlined_call_operand.vmem [shape: f32[8,64], index: 7, kind: input, shape index: {}]
  %s8 = inlined_call_operand.vmem [shape: f32[16,2], index: 8, kind: output, shape index: {}]
  %s9 = sld [smem:[#allocation0]]
  $region42: #{tpu_custom_call.1} parent=0
    _
  %s11 = ssub.s32 1, %s9
  %s12 = scalar_select 0, %s11, %s9
  // Predicated region
  $region2: #{tpu_custom_call.1} parent=0 // pred_check
    _
  $region3: #{tpu_custom_call.1} parent=0 // pred_check_branch
    %14 = sbr.rel (0) target = $region5
  $region4: #{tpu_custom_call.1} parent=0 // pred_region
    _
  $region5: #{tpu_custom_call.1} parent=0 // pred_fallthru
    _
  // Predicated region
  $region6: #{tpu_custom_call.1} parent=0 // pred_check
    _
  $region7: #{tpu_custom_call.1} parent=0 // pred_check_branch
    %16 = sbr.rel (0) target = $region9
  $region8: #{tpu_custom_call.1} parent=0 // pred_region
    _
  $region9: #{tpu_custom_call.1} parent=0 // pred_fallthru
    _
  // Predicated region
  $region10: #{tpu_custom_call.1} parent=0 // pred_check
    _
  $region11: #{tpu_custom_call.1} parent=0 // pred_check_branch
    %18 = sbr.rel (0) target = $region13
  $region12: #{tpu_custom_call.1} parent=0 // pred_region
    _
  $region13: #{tpu_custom_call.1} parent=0 // pred_fallthru
    _
  // Predicated region
  $region14: #{tpu_custom_call.1} parent=0 // pred_check
    _
  $region15: #{tpu_custom_call.1} parent=0 // pred_check_branch
    %20 = sbr.rel (0) target = $region17
  $region16: #{tpu_custom_call.1} parent=0 // pred_region
    _
  $region17: #{tpu_custom_call.1} parent=0 // pred_fallthru
    _
  // Predicated region
  $region18: #{tpu_custom_call.1} parent=0 // pred_check
    _
  $region19: #{tpu_custom_call.1} parent=0 // pred_check_branch
    %22 = sbr.rel (0) target = $region21
  $region20: #{tpu_custom_call.1} parent=0 // pred_region
    _
  $region21: #{tpu_custom_call.1} parent=0 // pred_fallthru
    _
  // Predicated region
  $region22: #{tpu_custom_call.1} parent=0 // pred_check
    _
  $region23: #{tpu_custom_call.1} parent=0 // pred_check_branch
    %24 = sbr.rel (0) target = $region25
  $region24: #{tpu_custom_call.1} parent=0 // pred_region
    _
  $region25: #{tpu_custom_call.1} parent=0 // pred_fallthru
    _
  // Predicated region
  $region26: #{tpu_custom_call.1} parent=0 // pred_check
    _
  $region27: #{tpu_custom_call.1} parent=0 // pred_check_branch
    %26 = sbr.rel (0) target = $region29
  $region28: #{tpu_custom_call.1} parent=0 // pred_region
    _
  $region29: #{tpu_custom_call.1} parent=0 // pred_fallthru
    _
  // Predicated region
  $region30: #{tpu_custom_call.1} parent=0 // pred_check
    _
  $region31: #{tpu_custom_call.1} parent=0 // pred_check_branch
    %28 = sbr.rel (0) target = $region33
  $region32: #{tpu_custom_call.1} parent=0 // pred_region
    _
  $region33: #{tpu_custom_call.1} parent=0 // pred_fallthru
    _
  %v29 = vld [vmem:[%s0] sm:$0xff]
  %v30 = vld [vmem:[%s0 + $0x8] sm:$0xff]
  %v31 = vld [vmem:[%s0 + $0x10] sm:$0xff]
  %v32 = vld [vmem:[%s0 + $0x18] sm:$0xff]
  %v33 = vld [vmem:[%s0 + $0x20] sm:$0xff]
  %v34 = vld [vmem:[%s0 + $0x28] sm:$0xff]
  %v35 = vld [vmem:[%s0 + $0x30] sm:$0xff]
  %v36 = vld [vmem:[%s0 + $0x38] sm:$0xff]
  %v37 = vld [vmem:[%s0 + $0x40] sm:$0xff]
  %v38 = vld [vmem:[%s1] sm:$0xff]
  %v39 = vld [vmem:[%s1 + $0x8] sm:$0xff]
  %v40 = vld [vmem:[%s1 + $0x10] sm:$0xff]
  %v41 = vld [vmem:[%s1 + $0x18] sm:$0xff]
  %v42 = vld [vmem:[%s1 + $0x20] sm:$0xff]
  %v43 = vld [vmem:[%s1 + $0x28] sm:$0xff]
  %v44 = vld [vmem:[%s1 + $0x30] sm:$0xff]
  %v45 = vld [vmem:[%s1 + $0x38] sm:$0xff]
  %v46 = vld [vmem:[%s1 + $0x40] sm:$0xff]
  %v47 = vld [vmem:[%s1 + $0x48] sm:$0xff]
  %v48 = vld [vmem:[%s1 + $0x50] sm:$0xff]
  %v49 = vld [vmem:[%s1 + $0x58] sm:$0xff]
  %v50 = vld [vmem:[%s1 + $0x60] sm:$0xff]
  %v51 = vld [vmem:[%s1 + $0x68] sm:$0xff]
  %v52 = vld [vmem:[%s1 + $0x70] sm:$0xff]
  %v53 = vld [vmem:[%s1 + $0x78] sm:$0xff]
  %v54 = vld [vmem:[%s1 + $0x80] sm:$0xff]
  %v55 = vld [vmem:[%s1 + $0x88] sm:$0xff]
  %v56 = vld [vmem:[%s1 + $0x90] sm:$0xff]
  %v57 = vld [vmem:[%s1 + $0x98] sm:$0xff]
  %v58 = vld [vmem:[%s1 + $0xa0] sm:$0xff]
  %v59 = vld [vmem:[%s1 + $0xa8] sm:$0xff]
  %v60 = vld [vmem:[%s1 + $0xb0] sm:$0xff]
  %v61 = vld [vmem:[%s1 + $0xb8] sm:$0xff]
  %v62 = vld [vmem:[%s1 + $0xc0] sm:$0xff]
  %v63 = vld [vmem:[%s1 + $0xc8] sm:$0xff]
  %v64 = vld [vmem:[%s1 + $0xd0] sm:$0xff]
  %v65 = vld [vmem:[%s1 + $0xd8] sm:$0xff]
  %v66 = vld [vmem:[%s1 + $0xe0] sm:$0xff]
  %v67 = vld [vmem:[%s1 + $0xe8] sm:$0xff]
  %v68 = vld [vmem:[%s1 + $0xf0] sm:$0xff]
  %v69 = vld [vmem:[%s1 + $0xf8] sm:$0xff]
  %v70 = vld [vmem:[%s1 + $0x100] sm:$0xff]
  %v71 = vld [vmem:[%s1 + $0x108] sm:$0xff]
  %v72 = vld [vmem:[%s1 + $0x110] sm:$0xff]
  %v73 = vld [vmem:[%s1 + $0x118] sm:$0xff]
  %v74 = vld [vmem:[%s1 + $0x120] sm:$0xff]
  %v75 = vld [vmem:[%s1 + $0x128] sm:$0xff]
  %v76 = vld [vmem:[%s1 + $0x130] sm:$0xff]
  %v77 = vld [vmem:[%s1 + $0x138] sm:$0xff]
  %v78 = vld [vmem:[%s1 + $0x140] sm:$0xff]
  %v79 = vld [vmem:[%s1 + $0x148] sm:$0xff]
  %v80 = vld [vmem:[%s1 + $0x150] sm:$0xff]
  %v81 = vld [vmem:[%s1 + $0x158] sm:$0xff]
  %v82 = vld [vmem:[%s1 + $0x160] sm:$0xff]
  %v83 = vld [vmem:[%s1 + $0x168] sm:$0xff]
  %v84 = vld [vmem:[%s1 + $0x170] sm:$0xff]
  %v85 = vld [vmem:[%s1 + $0x178] sm:$0xff]
  %v86 = vld [vmem:[%s1 + $0x180] sm:$0xff]
  %v87 = vld [vmem:[%s1 + $0x188] sm:$0xff]
  %v88 = vld [vmem:[%s1 + $0x190] sm:$0xff]
  %v89 = vld [vmem:[%s1 + $0x198] sm:$0xff]
  %v90 = vld [vmem:[%s1 + $0x1a0] sm:$0xff]
  %v91 = vld [vmem:[%s1 + $0x1a8] sm:$0xff]
  %v92 = vld [vmem:[%s1 + $0x1b0] sm:$0xff]
  %v93 = vld [vmem:[%s1 + $0x1b8] sm:$0xff]
  %v94 = vld [vmem:[%s1 + $0x1c0] sm:$0xff]
  %v95 = vld [vmem:[%s1 + $0x1c8] sm:$0xff]
  %v96 = vld [vmem:[%s1 + $0x1d0] sm:$0xff]
  %v97 = vld [vmem:[%s1 + $0x1d8] sm:$0xff]
  %v98 = vld [vmem:[%s1 + $0x1e0] sm:$0xff]
  %v99 = vld [vmem:[%s1 + $0x1e8] sm:$0xff]
  %v100 = vld [vmem:[%s1 + $0x1f0] sm:$0xff]
  %v101 = vld [vmem:[%s1 + $0x1f8] sm:$0xff]
  %v102 = vld [vmem:[%s2] sm:$0xff]
  %v103 = vld [vmem:[%s2 + $0x8] sm:$0xff]
  %v104 = vld [vmem:[%s2 + $0x10] sm:$0xff]
  %v105 = vld [vmem:[%s2 + $0x18] sm:$0xff]
  %v106 = vld [vmem:[%s2 + $0x20] sm:$0xff]
  %v107 = vld [vmem:[%s2 + $0x28] sm:$0xff]
  %v108 = vld [vmem:[%s2 + $0x30] sm:$0xff]
  %v109 = vld [vmem:[%s2 + $0x38] sm:$0xff]
  %v110 = vld [vmem:[%s2 + $0x40] sm:$0xff]
  %v111 = vld [vmem:[%s2 + $0x48] sm:$0xff]
  %v112 = vld [vmem:[%s2 + $0x50] sm:$0xff]
  %v113 = vld [vmem:[%s2 + $0x58] sm:$0xff]
  %v114 = vld [vmem:[%s2 + $0x60] sm:$0xff]
  %v115 = vld [vmem:[%s2 + $0x68] sm:$0xff]
  %v116 = vld [vmem:[%s2 + $0x70] sm:$0xff]
  %v117 = vld [vmem:[%s2 + $0x78] sm:$0xff]
  %v118 = vld [vmem:[%s2 + $0x80] sm:$0xff]
  %v119 = vld [vmem:[%s2 + $0x88] sm:$0xff]
  %v120 = vld [vmem:[%s2 + $0x90] sm:$0xff]
  %v121 = vld [vmem:[%s2 + $0x98] sm:$0xff]
  %v122 = vld [vmem:[%s2 + $0xa0] sm:$0xff]
  %v123 = vld [vmem:[%s2 + $0xa8] sm:$0xff]
  %v124 = vld [vmem:[%s2 + $0xb0] sm:$0xff]
  %v125 = vld [vmem:[%s2 + $0xb8] sm:$0xff]
  %v126 = vld [vmem:[%s2 + $0xc0] sm:$0xff]
  %v127 = vld [vmem:[%s2 + $0xc8] sm:$0xff]
  %v128 = vld [vmem:[%s2 + $0xd0] sm:$0xff]
  %v129 = vld [vmem:[%s2 + $0xd8] sm:$0xff]
  %v130 = vld [vmem:[%s2 + $0xe0] sm:$0xff]
  %v131 = vld [vmem:[%s2 + $0xe8] sm:$0xff]
  %v132 = vld [vmem:[%s2 + $0xf0] sm:$0xff]
  %v133 = vld [vmem:[%s2 + $0xf8] sm:$0xff]
  %v134 = vld [vmem:[%s2 + $0x100] sm:$0xff]
  %v135 = vld [vmem:[%s2 + $0x108] sm:$0xff]
  %v136 = vld [vmem:[%s2 + $0x110] sm:$0xff]
  %v137 = vld [vmem:[%s2 + $0x118] sm:$0xff]
  %v138 = vld [vmem:[%s2 + $0x120] sm:$0xff]
  %v139 = vld [vmem:[%s2 + $0x128] sm:$0xff]
  %v140 = vld [vmem:[%s2 + $0x130] sm:$0xff]
  %v141 = vld [vmem:[%s2 + $0x138] sm:$0xff]
  %v142 = vld [vmem:[%s2 + $0x140] sm:$0xff]
  %v143 = vld [vmem:[%s2 + $0x148] sm:$0xff]
  %v144 = vld [vmem:[%s2 + $0x150] sm:$0xff]
  %v145 = vld [vmem:[%s2 + $0x158] sm:$0xff]
  %v146 = vld [vmem:[%s2 + $0x160] sm:$0xff]
  %v147 = vld [vmem:[%s2 + $0x168] sm:$0xff]
  %v148 = vld [vmem:[%s2 + $0x170] sm:$0xff]
  %v149 = vld [vmem:[%s2 + $0x178] sm:$0xff]
  %v150 = vld [vmem:[%s2 + $0x180] sm:$0xff]
  %v151 = vld [vmem:[%s2 + $0x188] sm:$0xff]
  %v152 = vld [vmem:[%s2 + $0x190] sm:$0xff]
  %v153 = vld [vmem:[%s2 + $0x198] sm:$0xff]
  %v154 = vld [vmem:[%s2 + $0x1a0] sm:$0xff]
  %v155 = vld [vmem:[%s2 + $0x1a8] sm:$0xff]
  %v156 = vld [vmem:[%s2 + $0x1b0] sm:$0xff]
  %v157 = vld [vmem:[%s2 + $0x1b8] sm:$0xff]
  %v158 = vld [vmem:[%s2 + $0x1c0] sm:$0xff]
  %v159 = vld [vmem:[%s2 + $0x1c8] sm:$0xff]
  %v160 = vld [vmem:[%s2 + $0x1d0] sm:$0xff]
  %v161 = vld [vmem:[%s2 + $0x1d8] sm:$0xff]
  %v162 = vld [vmem:[%s2 + $0x1e0] sm:$0xff]
  %v163 = vld [vmem:[%s2 + $0x1e8] sm:$0xff]
  %v164 = vld [vmem:[%s2 + $0x1f0] sm:$0xff]
  %v165 = vld [vmem:[%s2 + $0x1f8] sm:$0xff]
  %167 = vset.pattern.permute.xlu0 0
  %168 = vperm.xlu0 %167, %v102
  %v169 = vpop.permute.xlu0 %168
  %172 = vset.pattern.permute.xlu0 0
  %173 = vperm.xlu0 %172, %v103
  %v174 = vpop.permute.xlu0 %173
  %177 = vset.pattern.permute.xlu0 0
  %178 = vperm.xlu0 %177, %v104
  %v179 = vpop.permute.xlu0 %178
  %182 = vset.pattern.permute.xlu0 0
  %183 = vperm.xlu0 %182, %v105
  %v184 = vpop.permute.xlu0 %183
  %187 = vset.pattern.permute.xlu0 0
  %188 = vperm.xlu0 %187, %v106
  %v189 = vpop.permute.xlu0 %188
  %192 = vset.pattern.permute.xlu0 0
  %193 = vperm.xlu0 %192, %v107
  %v194 = vpop.permute.xlu0 %193
  %197 = vset.pattern.permute.xlu0 0
  %198 = vperm.xlu0 %197, %v108
  %v199 = vpop.permute.xlu0 %198
  %202 = vset.pattern.permute.xlu0 0
  %203 = vperm.xlu0 %202, %v109
  %v204 = vpop.permute.xlu0 %203
  %207 = vset.pattern.permute.xlu0 0
  %208 = vperm.xlu0 %207, %v110
  %v209 = vpop.permute.xlu0 %208
  %212 = vset.pattern.permute.xlu0 0
  %213 = vperm.xlu0 %212, %v111
  %v214 = vpop.permute.xlu0 %213
  %217 = vset.pattern.permute.xlu0 0
  %218 = vperm.xlu0 %217, %v112
  %v219 = vpop.permute.xlu0 %218
  %222 = vset.pattern.permute.xlu0 0
  %223 = vperm.xlu0 %222, %v113
  %v224 = vpop.permute.xlu0 %223
  %227 = vset.pattern.permute.xlu0 0
  %228 = vperm.xlu0 %227, %v114
  %v229 = vpop.permute.xlu0 %228
  %232 = vset.pattern.permute.xlu0 0
  %233 = vperm.xlu0 %232, %v115
  %v234 = vpop.permute.xlu0 %233
  %237 = vset.pattern.permute.xlu0 0
  %238 = vperm.xlu0 %237, %v116
  %v239 = vpop.permute.xlu0 %238
  %242 = vset.pattern.permute.xlu0 0
  %243 = vperm.xlu0 %242, %v117
  %v244 = vpop.permute.xlu0 %243
  %247 = vset.pattern.permute.xlu0 0
  %248 = vperm.xlu0 %247, %v118
  %v249 = vpop.permute.xlu0 %248
  %252 = vset.pattern.permute.xlu0 0
  %253 = vperm.xlu0 %252, %v119
  %v254 = vpop.permute.xlu0 %253
  %257 = vset.pattern.permute.xlu0 0
  %258 = vperm.xlu0 %257, %v120
  %v259 = vpop.permute.xlu0 %258
  %262 = vset.pattern.permute.xlu0 0
  %263 = vperm.xlu0 %262, %v121
  %v264 = vpop.permute.xlu0 %263
  %267 = vset.pattern.permute.xlu0 0
  %268 = vperm.xlu0 %267, %v122
  %v269 = vpop.permute.xlu0 %268
  %272 = vset.pattern.permute.xlu0 0
  %273 = vperm.xlu0 %272, %v123
  %v274 = vpop.permute.xlu0 %273
  %277 = vset.pattern.permute.xlu0 0
  %278 = vperm.xlu0 %277, %v124
  %v279 = vpop.permute.xlu0 %278
  %282 = vset.pattern.permute.xlu0 0
  %283 = vperm.xlu0 %282, %v125
  %v284 = vpop.permute.xlu0 %283
  %287 = vset.pattern.permute.xlu0 0
  %288 = vperm.xlu0 %287, %v126
  %v289 = vpop.permute.xlu0 %288
  %292 = vset.pattern.permute.xlu0 0
  %293 = vperm.xlu0 %292, %v127
  %v294 = vpop.permute.xlu0 %293
  %297 = vset.pattern.permute.xlu0 0
  %298 = vperm.xlu0 %297, %v128
  %v299 = vpop.permute.xlu0 %298
  %302 = vset.pattern.permute.xlu0 0
  %303 = vperm.xlu0 %302, %v129
  %v304 = vpop.permute.xlu0 %303
  %307 = vset.pattern.permute.xlu0 0
  %308 = vperm.xlu0 %307, %v130
  %v309 = vpop.permute.xlu0 %308
  %312 = vset.pattern.permute.xlu0 0
  %313 = vperm.xlu0 %312, %v131
  %v314 = vpop.permute.xlu0 %313
  %317 = vset.pattern.permute.xlu0 0
  %318 = vperm.xlu0 %317, %v132
  %v319 = vpop.permute.xlu0 %318
  %322 = vset.pattern.permute.xlu0 0
  %323 = vperm.xlu0 %322, %v133
  %v324 = vpop.permute.xlu0 %323
  %327 = vset.pattern.permute.xlu0 0
  %328 = vperm.xlu0 %327, %v134
  %v329 = vpop.permute.xlu0 %328
  %332 = vset.pattern.permute.xlu0 0
  %333 = vperm.xlu0 %332, %v135
  %v334 = vpop.permute.xlu0 %333
  %337 = vset.pattern.permute.xlu0 0
  %338 = vperm.xlu0 %337, %v136
  %v339 = vpop.permute.xlu0 %338
  %342 = vset.pattern.permute.xlu0 0
  %343 = vperm.xlu0 %342, %v137
  %v344 = vpop.permute.xlu0 %343
  %347 = vset.pattern.permute.xlu0 0
  %348 = vperm.xlu0 %347, %v138
  %v349 = vpop.permute.xlu0 %348
  %352 = vset.pattern.permute.xlu0 0
  %353 = vperm.xlu0 %352, %v139
  %v354 = vpop.permute.xlu0 %353
  %357 = vset.pattern.permute.xlu0 0
  %358 = vperm.xlu0 %357, %v140
  %v359 = vpop.permute.xlu0 %358
  %362 = vset.pattern.permute.xlu0 0
  %363 = vperm.xlu0 %362, %v141
  %v364 = vpop.permute.xlu0 %363
  %367 = vset.pattern.permute.xlu0 0
  %368 = vperm.xlu0 %367, %v142
  %v369 = vpop.permute.xlu0 %368
  %372 = vset.pattern.permute.xlu0 0
  %373 = vperm.xlu0 %372, %v143
  %v374 = vpop.permute.xlu0 %373
  %377 = vset.pattern.permute.xlu0 0
  %378 = vperm.xlu0 %377, %v144
  %v379 = vpop.permute.xlu0 %378
  %382 = vset.pattern.permute.xlu0 0
  %383 = vperm.xlu0 %382, %v145
  %v384 = vpop.permute.xlu0 %383
  %387 = vset.pattern.permute.xlu0 0
  %388 = vperm.xlu0 %387, %v146
  %v389 = vpop.permute.xlu0 %388
  %392 = vset.pattern.permute.xlu0 0
  %393 = vperm.xlu0 %392, %v147
  %v394 = vpop.permute.xlu0 %393
  %397 = vset.pattern.permute.xlu0 0
  %398 = vperm.xlu0 %397, %v148
  %v399 = vpop.permute.xlu0 %398
  %402 = vset.pattern.permute.xlu0 0
  %403 = vperm.xlu0 %402, %v149
  %v404 = vpop.permute.xlu0 %403
  %407 = vset.pattern.permute.xlu0 0
  %408 = vperm.xlu0 %407, %v150
  %v409 = vpop.permute.xlu0 %408
  %412 = vset.pattern.permute.xlu0 0
  %413 = vperm.xlu0 %412, %v151
  %v414 = vpop.permute.xlu0 %413
  %417 = vset.pattern.permute.xlu0 0
  %418 = vperm.xlu0 %417, %v152
  %v419 = vpop.permute.xlu0 %418
  %422 = vset.pattern.permute.xlu0 0
  %423 = vperm.xlu0 %422, %v153
  %v424 = vpop.permute.xlu0 %423
  %427 = vset.pattern.permute.xlu0 0
  %428 = vperm.xlu0 %427, %v154
  %v429 = vpop.permute.xlu0 %428
  %432 = vset.pattern.permute.xlu0 0
  %433 = vperm.xlu0 %432, %v155
  %v434 = vpop.permute.xlu0 %433
  %437 = vset.pattern.permute.xlu0 0
  %438 = vperm.xlu0 %437, %v156
  %v439 = vpop.permute.xlu0 %438
  %442 = vset.pattern.permute.xlu0 0
  %443 = vperm.xlu0 %442, %v157
  %v444 = vpop.permute.xlu0 %443
  %447 = vset.pattern.permute.xlu0 0
  %448 = vperm.xlu0 %447, %v158
  %v449 = vpop.permute.xlu0 %448
  %452 = vset.pattern.permute.xlu0 0
  %453 = vperm.xlu0 %452, %v159
  %v454 = vpop.permute.xlu0 %453
  %457 = vset.pattern.permute.xlu0 0
  %458 = vperm.xlu0 %457, %v160
  %v459 = vpop.permute.xlu0 %458
  %462 = vset.pattern.permute.xlu0 0
  %463 = vperm.xlu0 %462, %v161
  %v464 = vpop.permute.xlu0 %463
  %467 = vset.pattern.permute.xlu0 0
  %468 = vperm.xlu0 %467, %v162
  %v469 = vpop.permute.xlu0 %468
  %472 = vset.pattern.permute.xlu0 0
  %473 = vperm.xlu0 %472, %v163
  %v474 = vpop.permute.xlu0 %473
  %477 = vset.pattern.permute.xlu0 0
  %478 = vperm.xlu0 %477, %v164
  %v479 = vpop.permute.xlu0 %478
  %482 = vset.pattern.permute.xlu0 0
  %483 = vperm.xlu0 %482, %v165
  %v484 = vpop.permute.xlu0 %483
  %vm486 = vcmask 588800
  %v488 = vsel %vm486, %v38, 0
  %v491 = vsel %vm486, %v39, 0
  %v494 = vsel %vm486, %v40, 0
  %v497 = vsel %vm486, %v41, 0
  %v500 = vsel %vm486, %v42, 0
  %v503 = vsel %vm486, %v43, 0
  %v506 = vsel %vm486, %v44, 0
  %v509 = vsel %vm486, %v45, 0
  %v512 = vsel %vm486, %v46, 0
  %v515 = vsel %vm486, %v47, 0
  %v518 = vsel %vm486, %v48, 0
  %v521 = vsel %vm486, %v49, 0
  %v524 = vsel %vm486, %v50, 0
  %v527 = vsel %vm486, %v51, 0
  %v530 = vsel %vm486, %v52, 0
  %v533 = vsel %vm486, %v53, 0
  %v536 = vsel %vm486, %v54, 0
  %v539 = vsel %vm486, %v55, 0
  %v542 = vsel %vm486, %v56, 0
  %v545 = vsel %vm486, %v57, 0
  %v548 = vsel %vm486, %v58, 0
  %v551 = vsel %vm486, %v59, 0
  %v554 = vsel %vm486, %v60, 0
  %v557 = vsel %vm486, %v61, 0
  %v560 = vsel %vm486, %v62, 0
  %v563 = vsel %vm486, %v63, 0
  %v566 = vsel %vm486, %v64, 0
  %v569 = vsel %vm486, %v65, 0
  %v572 = vsel %vm486, %v66, 0
  %v575 = vsel %vm486, %v67, 0
  %v578 = vsel %vm486, %v68, 0
  %v581 = vsel %vm486, %v69, 0
  %v584 = vsel %vm486, %v70, 0
  %v587 = vsel %vm486, %v71, 0
  %v590 = vsel %vm486, %v72, 0
  %v593 = vsel %vm486, %v73, 0
  %v596 = vsel %vm486, %v74, 0
  %v599 = vsel %vm486, %v75, 0
  %v602 = vsel %vm486, %v76, 0
  %v605 = vsel %vm486, %v77, 0
  %v608 = vsel %vm486, %v78, 0
  %v611 = vsel %vm486, %v79, 0
  %v614 = vsel %vm486, %v80, 0
  %v617 = vsel %vm486, %v81, 0
  %v620 = vsel %vm486, %v82, 0
  %v623 = vsel %vm486, %v83, 0
  %v626 = vsel %vm486, %v84, 0
  %v629 = vsel %vm486, %v85, 0
  %v632 = vsel %vm486, %v86, 0
  %v635 = vsel %vm486, %v87, 0
  %v638 = vsel %vm486, %v88, 0
  %v641 = vsel %vm486, %v89, 0
  %v644 = vsel %vm486, %v90, 0
  %v647 = vsel %vm486, %v91, 0
  %v650 = vsel %vm486, %v92, 0
  %v653 = vsel %vm486, %v93, 0
  %v656 = vsel %vm486, %v94, 0
  %v659 = vsel %vm486, %v95, 0
  %v662 = vsel %vm486, %v96, 0
  %v665 = vsel %vm486, %v97, 0
  %v668 = vsel %vm486, %v98, 0
  %v671 = vsel %vm486, %v99, 0
  %v674 = vsel %vm486, %v100, 0
  %v677 = vsel %vm486, %v101, 0
  %679 = vmatprep.subr.mxu0 0.0
  %680 = vmatpush1.msra.mxu0 0.0
  %681 = vmatprep.subr.mxu0 0.0
  %682 = vmatpush1.msra.mxu0 0.0
  %683 = vmatprep.subr.mxu0 0.0
  %684 = vmatpush1.msra.mxu0 0.0
  %685 = vmatprep.subr.mxu0 0.0
  %686 = vmatpush1.msra.mxu0 0.0
  %687 = vmatprep.subr.mxu0 0.0
  %688 = vmatpush1.msra.mxu0 0.0
  %689 = vmatprep.subr.mxu0 0.0
  %690 = vmatpush1.msra.mxu0 0.0
  %691 = vmatprep.subr.mxu0 0.0
  %692 = vmatpush1.msra.mxu0 0.0
  %693 = vmatprep.subr.mxu0 0.0
  %694 = vmatpush1.msra.mxu0 %v37
  %695 = vmatprep.subr.mxu0 0.0
  %696 = vmatpush1.msra.mxu0 %v36
  %697 = vmatprep.subr.mxu0 0.0
  %698 = vmatpush1.msra.mxu0 %v35
  %699 = vmatprep.subr.mxu0 0.0
  %700 = vmatpush1.msra.mxu0 %v34
  %701 = vmatprep.subr.mxu0 0.0
  %702 = vmatpush1.msra.mxu0 %v33
  %703 = vmatprep.subr.mxu0 0.0
  %704 = vmatpush1.msra.mxu0 %v32
  %705 = vmatprep.subr.mxu0 0.0
  %706 = vmatpush1.msra.mxu0 %v31
  %707 = vmatprep.subr.mxu0 0.0
  %708 = vmatpush1.msra.mxu0 %v30
  %709 = vmatprep.subr.mxu0 0.0
  %710 = vmatpush1.msra.mxu0 %v29
  %711 = vmatprep.subr.mxu0 0.0
  %712 = vmatpush2.msra.mxu0 0.0
  %713 = vmatprep.subr.mxu0 0.0
  %714 = vmatpush2.msra.mxu0 0.0
  %715 = vmatprep.subr.mxu0 0.0
  %716 = vmatpush2.msra.mxu0 0.0
  %717 = vmatprep.subr.mxu0 0.0
  %718 = vmatpush2.msra.mxu0 0.0
  %719 = vmatprep.subr.mxu0 0.0
  %720 = vmatpush2.msra.mxu0 0.0
  %721 = vmatprep.subr.mxu0 0.0
  %722 = vmatpush2.msra.mxu0 0.0
  %723 = vmatprep.subr.mxu0 0.0
  %724 = vmatpush2.msra.mxu0 0.0
  %725 = vmatprep.subr.mxu0 0.0
  %726 = vmatpush2.msra.mxu0 0.0
  %727 = vmatprep.subr.mxu0 0.0
  %728 = vmatpush2.msra.mxu0 0.0
  %729 = vmatprep.subr.mxu0 0.0
  %730 = vmatpush2.msra.mxu0 0.0
  %731 = vmatprep.subr.mxu0 0.0
  %732 = vmatpush2.msra.mxu0 0.0
  %733 = vmatprep.subr.mxu0 0.0
  %734 = vmatpush2.msra.mxu0 0.0
  %735 = vmatprep.subr.mxu0 0.0
  %736 = vmatpush2.msra.mxu0 0.0
  %737 = vmatprep.subr.mxu0 0.0
  %738 = vmatpush2.msra.mxu0 0.0
  %739 = vmatprep.subr.mxu0 0.0
  %740 = vmatpush2.msra.mxu0 0.0
  %741 = vmatprep.subr.mxu0 0.0
  %742 = vmatpush2.msra.mxu0 0.0
  %743 = vmatprep.mubr.f32.mxu0 0.0
  %744 = vmatmul.mubr.f32.gmra.mxu0 %v488
  %v745 = vpop.f32.mrf.mxu0
  %v746 = vadd.f32 %v169, %v745
  %v747 = vpop.f32.mrf.mxu0
  %748 = vmatprep.mubr.f32.mxu0 0.0
  %749 = vmatmul.mubr.f32.gmra.mxu0 %v491
  %v750 = vpop.f32.mrf.mxu0
  %v751 = vadd.f32 %v174, %v750
  %v752 = vpop.f32.mrf.mxu0
  %753 = vmatprep.mubr.f32.mxu0 0.0
  %754 = vmatmul.mubr.f32.gmra.mxu0 %v494
  %v755 = vpop.f32.mrf.mxu0
  %v756 = vadd.f32 %v179, %v755
  %v757 = vpop.f32.mrf.mxu0
  %758 = vmatprep.mubr.f32.mxu0 0.0
  %759 = vmatmul.mubr.f32.gmra.mxu0 %v497
  %v760 = vpop.f32.mrf.mxu0
  %v761 = vadd.f32 %v184, %v760
  %v762 = vpop.f32.mrf.mxu0
  %763 = vmatprep.mubr.f32.mxu0 0.0
  %764 = vmatmul.mubr.f32.gmra.mxu0 %v500
  %v765 = vpop.f32.mrf.mxu0
  %v766 = vadd.f32 %v189, %v765
  %v767 = vpop.f32.mrf.mxu0
  %768 = vmatprep.mubr.f32.mxu0 0.0
  %769 = vmatmul.mubr.f32.gmra.mxu0 %v503
  %v770 = vpop.f32.mrf.mxu0
  %v771 = vadd.f32 %v194, %v770
  %v772 = vpop.f32.mrf.mxu0
  %773 = vmatprep.mubr.f32.mxu0 0.0
  %774 = vmatmul.mubr.f32.gmra.mxu0 %v506
  %v775 = vpop.f32.mrf.mxu0
  %v776 = vadd.f32 %v199, %v775
  %v777 = vpop.f32.mrf.mxu0
  %778 = vmatprep.mubr.f32.mxu0 0.0
  %779 = vmatmul.mubr.f32.gmra.mxu0 %v509
  %v780 = vpop.f32.mrf.mxu0
  %v781 = vadd.f32 %v204, %v780
  %v782 = vpop.f32.mrf.mxu0
  %783 = vmatprep.mubr.f32.mxu0 0.0
  %784 = vmatmul.mubr.f32.gmra.mxu0 %v512
  %v785 = vpop.f32.mrf.mxu0
  %v786 = vadd.f32 %v209, %v785
  %v787 = vpop.f32.mrf.mxu0
  %788 = vmatprep.mubr.f32.mxu0 0.0
  %789 = vmatmul.mubr.f32.gmra.mxu0 %v515
  %v790 = vpop.f32.mrf.mxu0
  %v791 = vadd.f32 %v214, %v790
  %v792 = vpop.f32.mrf.mxu0
  %793 = vmatprep.mubr.f32.mxu0 0.0
  %794 = vmatmul.mubr.f32.gmra.mxu0 %v518
  %v795 = vpop.f32.mrf.mxu0
  %v796 = vadd.f32 %v219, %v795
  %v797 = vpop.f32.mrf.mxu0
  %798 = vmatprep.mubr.f32.mxu0 0.0
  %799 = vmatmul.mubr.f32.gmra.mxu0 %v521
  %v800 = vpop.f32.mrf.mxu0
  %v801 = vadd.f32 %v224, %v800
  %v802 = vpop.f32.mrf.mxu0
  %803 = vmatprep.mubr.f32.mxu0 0.0
  %804 = vmatmul.mubr.f32.gmra.mxu0 %v524
  %v805 = vpop.f32.mrf.mxu0
  %v806 = vadd.f32 %v229, %v805
  %v807 = vpop.f32.mrf.mxu0
  %808 = vmatprep.mubr.f32.mxu0 0.0
  %809 = vmatmul.mubr.f32.gmra.mxu0 %v527
  %v810 = vpop.f32.mrf.mxu0
  %v811 = vadd.f32 %v234, %v810
  %v812 = vpop.f32.mrf.mxu0
  %813 = vmatprep.mubr.f32.mxu0 0.0
  %814 = vmatmul.mubr.f32.gmra.mxu0 %v530
  %v815 = vpop.f32.mrf.mxu0
  %v816 = vadd.f32 %v239, %v815
  %v817 = vpop.f32.mrf.mxu0
  %818 = vmatprep.mubr.f32.mxu0 0.0
  %819 = vmatmul.mubr.f32.gmra.mxu0 %v533
  %v820 = vpop.f32.mrf.mxu0
  %v821 = vadd.f32 %v244, %v820
  %v822 = vpop.f32.mrf.mxu0
  %823 = vmatprep.mubr.f32.mxu0 0.0
  %824 = vmatmul.mubr.f32.gmra.mxu0 %v536
  %v825 = vpop.f32.mrf.mxu0
  %v826 = vadd.f32 %v249, %v825
  %v827 = vpop.f32.mrf.mxu0
  %828 = vmatprep.mubr.f32.mxu0 0.0
  %829 = vmatmul.mubr.f32.gmra.mxu0 %v539
  %v830 = vpop.f32.mrf.mxu0
  %v831 = vadd.f32 %v254, %v830
  %v832 = vpop.f32.mrf.mxu0
  %833 = vmatprep.mubr.f32.mxu0 0.0
  %834 = vmatmul.mubr.f32.gmra.mxu0 %v542
  %v835 = vpop.f32.mrf.mxu0
  %v836 = vadd.f32 %v259, %v835
  %v837 = vpop.f32.mrf.mxu0
  %838 = vmatprep.mubr.f32.mxu0 0.0
  %839 = vmatmul.mubr.f32.gmra.mxu0 %v545
  %v840 = vpop.f32.mrf.mxu0
  %v841 = vadd.f32 %v264, %v840
  %v842 = vpop.f32.mrf.mxu0
  %843 = vmatprep.mubr.f32.mxu0 0.0
  %844 = vmatmul.mubr.f32.gmra.mxu0 %v548
  %v845 = vpop.f32.mrf.mxu0
  %v846 = vadd.f32 %v269, %v845
  %v847 = vpop.f32.mrf.mxu0
  %848 = vmatprep.mubr.f32.mxu0 0.0
  %849 = vmatmul.mubr.f32.gmra.mxu0 %v551
  %v850 = vpop.f32.mrf.mxu0
  %v851 = vadd.f32 %v274, %v850
  %v852 = vpop.f32.mrf.mxu0
  %853 = vmatprep.mubr.f32.mxu0 0.0
  %854 = vmatmul.mubr.f32.gmra.mxu0 %v554
  %v855 = vpop.f32.mrf.mxu0
  %v856 = vadd.f32 %v279, %v855
  %v857 = vpop.f32.mrf.mxu0
  %858 = vmatprep.mubr.f32.mxu0 0.0
  %859 = vmatmul.mubr.f32.gmra.mxu0 %v557
  %v860 = vpop.f32.mrf.mxu0
  %v861 = vadd.f32 %v284, %v860
  %v862 = vpop.f32.mrf.mxu0
  %863 = vmatprep.mubr.f32.mxu0 0.0
  %864 = vmatmul.mubr.f32.gmra.mxu0 %v560
  %v865 = vpop.f32.mrf.mxu0
  %v866 = vadd.f32 %v289, %v865
  %v867 = vpop.f32.mrf.mxu0
  %868 = vmatprep.mubr.f32.mxu0 0.0
  %869 = vmatmul.mubr.f32.gmra.mxu0 %v563
  %v870 = vpop.f32.mrf.mxu0
  %v871 = vadd.f32 %v294, %v870
  %v872 = vpop.f32.mrf.mxu0
  %873 = vmatprep.mubr.f32.mxu0 0.0
  %874 = vmatmul.mubr.f32.gmra.mxu0 %v566
  %v875 = vpop.f32.mrf.mxu0
  %v876 = vadd.f32 %v299, %v875
  %v877 = vpop.f32.mrf.mxu0
  %878 = vmatprep.mubr.f32.mxu0 0.0
  %879 = vmatmul.mubr.f32.gmra.mxu0 %v569
  %v880 = vpop.f32.mrf.mxu0
  %v881 = vadd.f32 %v304, %v880
  %v882 = vpop.f32.mrf.mxu0
  %883 = vmatprep.mubr.f32.mxu0 0.0
  %884 = vmatmul.mubr.f32.gmra.mxu0 %v572
  %v885 = vpop.f32.mrf.mxu0
  %v886 = vadd.f32 %v309, %v885
  %v887 = vpop.f32.mrf.mxu0
  %888 = vmatprep.mubr.f32.mxu0 0.0
  %889 = vmatmul.mubr.f32.gmra.mxu0 %v575
  %v890 = vpop.f32.mrf.mxu0
  %v891 = vadd.f32 %v314, %v890
  %v892 = vpop.f32.mrf.mxu0
  %893 = vmatprep.mubr.f32.mxu0 0.0
  %894 = vmatmul.mubr.f32.gmra.mxu0 %v578
  %v895 = vpop.f32.mrf.mxu0
  %v896 = vadd.f32 %v319, %v895
  %v897 = vpop.f32.mrf.mxu0
  %898 = vmatprep.mubr.f32.mxu0 0.0
  %899 = vmatmul.mubr.f32.gmra.mxu0 %v581
  %v900 = vpop.f32.mrf.mxu0
  %v901 = vadd.f32 %v324, %v900
  %v902 = vpop.f32.mrf.mxu0
  %903 = vmatprep.mubr.f32.mxu0 0.0
  %904 = vmatmul.mubr.f32.gmra.mxu0 %v584
  %v905 = vpop.f32.mrf.mxu0
  %v906 = vadd.f32 %v329, %v905
  %v907 = vpop.f32.mrf.mxu0
  %908 = vmatprep.mubr.f32.mxu0 0.0
  %909 = vmatmul.mubr.f32.gmra.mxu0 %v587
  %v910 = vpop.f32.mrf.mxu0
  %v911 = vadd.f32 %v334, %v910
  %v912 = vpop.f32.mrf.mxu0
  %913 = vmatprep.mubr.f32.mxu0 0.0
  %914 = vmatmul.mubr.f32.gmra.mxu0 %v590
  %v915 = vpop.f32.mrf.mxu0
  %v916 = vadd.f32 %v339, %v915
  %v917 = vpop.f32.mrf.mxu0
  %918 = vmatprep.mubr.f32.mxu0 0.0
  %919 = vmatmul.mubr.f32.gmra.mxu0 %v593
  %v920 = vpop.f32.mrf.mxu0
  %v921 = vadd.f32 %v344, %v920
  %v922 = vpop.f32.mrf.mxu0
  %923 = vmatprep.mubr.f32.mxu0 0.0
  %924 = vmatmul.mubr.f32.gmra.mxu0 %v596
  %v925 = vpop.f32.mrf.mxu0
  %v926 = vadd.f32 %v349, %v925
  %v927 = vpop.f32.mrf.mxu0
  %928 = vmatprep.mubr.f32.mxu0 0.0
  %929 = vmatmul.mubr.f32.gmra.mxu0 %v599
  %v930 = vpop.f32.mrf.mxu0
  %v931 = vadd.f32 %v354, %v930
  %v932 = vpop.f32.mrf.mxu0
  %933 = vmatprep.mubr.f32.mxu0 0.0
  %934 = vmatmul.mubr.f32.gmra.mxu0 %v602
  %v935 = vpop.f32.mrf.mxu0
  %v936 = vadd.f32 %v359, %v935
  %v937 = vpop.f32.mrf.mxu0
  %938 = vmatprep.mubr.f32.mxu0 0.0
  %939 = vmatmul.mubr.f32.gmra.mxu0 %v605
  %v940 = vpop.f32.mrf.mxu0
  %v941 = vadd.f32 %v364, %v940
  %v942 = vpop.f32.mrf.mxu0
  %943 = vmatprep.mubr.f32.mxu0 0.0
  %944 = vmatmul.mubr.f32.gmra.mxu0 %v608
  %v945 = vpop.f32.mrf.mxu0
  %v946 = vadd.f32 %v369, %v945
  %v947 = vpop.f32.mrf.mxu0
  %948 = vmatprep.mubr.f32.mxu0 0.0
  %949 = vmatmul.mubr.f32.gmra.mxu0 %v611
  %v950 = vpop.f32.mrf.mxu0
  %v951 = vadd.f32 %v374, %v950
  %v952 = vpop.f32.mrf.mxu0
  %953 = vmatprep.mubr.f32.mxu0 0.0
  %954 = vmatmul.mubr.f32.gmra.mxu0 %v614
  %v955 = vpop.f32.mrf.mxu0
  %v956 = vadd.f32 %v379, %v955
  %v957 = vpop.f32.mrf.mxu0
  %958 = vmatprep.mubr.f32.mxu0 0.0
  %959 = vmatmul.mubr.f32.gmra.mxu0 %v617
  %v960 = vpop.f32.mrf.mxu0
  %v961 = vadd.f32 %v384, %v960
  %v962 = vpop.f32.mrf.mxu0
  %963 = vmatprep.mubr.f32.mxu0 0.0
  %964 = vmatmul.mubr.f32.gmra.mxu0 %v620
  %v965 = vpop.f32.mrf.mxu0
  %v966 = vadd.f32 %v389, %v965
  %v967 = vpop.f32.mrf.mxu0
  %968 = vmatprep.mubr.f32.mxu0 0.0
  %969 = vmatmul.mubr.f32.gmra.mxu0 %v623
  %v970 = vpop.f32.mrf.mxu0
  %v971 = vadd.f32 %v394, %v970
  %v972 = vpop.f32.mrf.mxu0
  %973 = vmatprep.mubr.f32.mxu0 0.0
  %974 = vmatmul.mubr.f32.gmra.mxu0 %v626
  %v975 = vpop.f32.mrf.mxu0
  %v976 = vadd.f32 %v399, %v975
  %v977 = vpop.f32.mrf.mxu0
  %978 = vmatprep.mubr.f32.mxu0 0.0
  %979 = vmatmul.mubr.f32.gmra.mxu0 %v629
  %v980 = vpop.f32.mrf.mxu0
  %v981 = vadd.f32 %v404, %v980
  %v982 = vpop.f32.mrf.mxu0
  %983 = vmatprep.mubr.f32.mxu0 0.0
  %984 = vmatmul.mubr.f32.gmra.mxu0 %v632
  %v985 = vpop.f32.mrf.mxu0
  %v986 = vadd.f32 %v409, %v985
  %v987 = vpop.f32.mrf.mxu0
  %988 = vmatprep.mubr.f32.mxu0 0.0
  %989 = vmatmul.mubr.f32.gmra.mxu0 %v635
  %v990 = vpop.f32.mrf.mxu0
  %v991 = vadd.f32 %v414, %v990
  %v992 = vpop.f32.mrf.mxu0
  %993 = vmatprep.mubr.f32.mxu0 0.0
  %994 = vmatmul.mubr.f32.gmra.mxu0 %v638
  %v995 = vpop.f32.mrf.mxu0
  %v996 = vadd.f32 %v419, %v995
  %v997 = vpop.f32.mrf.mxu0
  %998 = vmatprep.mubr.f32.mxu0 0.0
  %999 = vmatmul.mubr.f32.gmra.mxu0 %v641
  %v1000 = vpop.f32.mrf.mxu0
  %v1001 = vadd.f32 %v424, %v1000
  %v1002 = vpop.f32.mrf.mxu0
  %1003 = vmatprep.mubr.f32.mxu0 0.0
  %1004 = vmatmul.mubr.f32.gmra.mxu0 %v644
  %v1005 = vpop.f32.mrf.mxu0
  %v1006 = vadd.f32 %v429, %v1005
  %v1007 = vpop.f32.mrf.mxu0
  %1008 = vmatprep.mubr.f32.mxu0 0.0
  %1009 = vmatmul.mubr.f32.gmra.mxu0 %v647
  %v1010 = vpop.f32.mrf.mxu0
  %v1011 = vadd.f32 %v434, %v1010
  %v1012 = vpop.f32.mrf.mxu0
  %1013 = vmatprep.mubr.f32.mxu0 0.0
  %1014 = vmatmul.mubr.f32.gmra.mxu0 %v650
  %v1015 = vpop.f32.mrf.mxu0
  %v1016 = vadd.f32 %v439, %v1015
  %v1017 = vpop.f32.mrf.mxu0
  %1018 = vmatprep.mubr.f32.mxu0 0.0
  %1019 = vmatmul.mubr.f32.gmra.mxu0 %v653
  %v1020 = vpop.f32.mrf.mxu0
  %v1021 = vadd.f32 %v444, %v1020
  %v1022 = vpop.f32.mrf.mxu0
  %1023 = vmatprep.mubr.f32.mxu0 0.0
  %1024 = vmatmul.mubr.f32.gmra.mxu0 %v656
  %v1025 = vpop.f32.mrf.mxu0
  %v1026 = vadd.f32 %v449, %v1025
  %v1027 = vpop.f32.mrf.mxu0
  %1028 = vmatprep.mubr.f32.mxu0 0.0
  %1029 = vmatmul.mubr.f32.gmra.mxu0 %v659
  %v1030 = vpop.f32.mrf.mxu0
  %v1031 = vadd.f32 %v454, %v1030
  %v1032 = vpop.f32.mrf.mxu0
  %1033 = vmatprep.mubr.f32.mxu0 0.0
  %1034 = vmatmul.mubr.f32.gmra.mxu0 %v662
  %v1035 = vpop.f32.mrf.mxu0
  %v1036 = vadd.f32 %v459, %v1035
  %v1037 = vpop.f32.mrf.mxu0
  %1038 = vmatprep.mubr.f32.mxu0 0.0
  %1039 = vmatmul.mubr.f32.gmra.mxu0 %v665
  %v1040 = vpop.f32.mrf.mxu0
  %v1041 = vadd.f32 %v464, %v1040
  %v1042 = vpop.f32.mrf.mxu0
  %1043 = vmatprep.mubr.f32.mxu0 0.0
  %1044 = vmatmul.mubr.f32.gmra.mxu0 %v668
  %v1045 = vpop.f32.mrf.mxu0
  %v1046 = vadd.f32 %v469, %v1045
  %v1047 = vpop.f32.mrf.mxu0
  %1048 = vmatprep.mubr.f32.mxu0 0.0
  %1049 = vmatmul.mubr.f32.gmra.mxu0 %v671
  %v1050 = vpop.f32.mrf.mxu0
  %v1051 = vadd.f32 %v474, %v1050
  %v1052 = vpop.f32.mrf.mxu0
  %1053 = vmatprep.mubr.f32.mxu0 0.0
  %1054 = vmatmul.mubr.f32.gmra.mxu0 %v674
  %v1055 = vpop.f32.mrf.mxu0
  %v1056 = vadd.f32 %v479, %v1055
  %v1057 = vpop.f32.mrf.mxu0
  %1058 = vmatprep.mubr.f32.mxu0 0.0
  %1059 = vmatmul.mubr.f32.gmra.mxu0 %v677
  %v1060 = vpop.f32.mrf.mxu0
  %v1061 = vadd.f32 %v484, %v1060
  %v1062 = vpop.f32.mrf.mxu0
  %1063 = vdwg.mxu0
  %v1064 = vld [vmem:[%s5] sm:$0xff]
  %v1065 = vld [vmem:[%s5 + $0x8] sm:$0xff]
  %v1066 = vmul.f32 %v746, %v906
  %v1067 = vmul.f32 %v751, %v911
  %v1068 = vmul.f32 %v756, %v916
  %v1069 = vmul.f32 %v761, %v921
  %v1070 = vmul.f32 %v766, %v926
  %v1071 = vmul.f32 %v771, %v931
  %v1072 = vmul.f32 %v776, %v936
  %v1073 = vmul.f32 %v781, %v941
  %v1074 = vmul.f32 %v786, %v946
  %v1075 = vmul.f32 %v791, %v951
  %v1076 = vmul.f32 %v796, %v956
  %v1077 = vmul.f32 %v801, %v961
  %v1078 = vmul.f32 %v806, %v966
  %v1079 = vmul.f32 %v811, %v971
  %v1080 = vmul.f32 %v816, %v976
  %v1081 = vmul.f32 %v821, %v981
  %v1082 = vmul.f32 %v826, %v986
  %v1083 = vmul.f32 %v831, %v991
  %v1084 = vmul.f32 %v836, %v996
  %v1085 = vmul.f32 %v841, %v1001
  %v1086 = vmul.f32 %v846, %v1006
  %v1087 = vmul.f32 %v851, %v1011
  %v1088 = vmul.f32 %v856, %v1016
  %v1089 = vmul.f32 %v861, %v1021
  %v1090 = vmul.f32 %v866, %v1026
  %v1091 = vmul.f32 %v871, %v1031
  %v1092 = vmul.f32 %v876, %v1036
  %v1093 = vmul.f32 %v881, %v1041
  %v1094 = vmul.f32 %v886, %v1046
  %v1095 = vmul.f32 %v891, %v1051
  %v1096 = vmul.f32 %v896, %v1056
  %v1097 = vmul.f32 %v901, %v1061
  %1098 = vmatprep.subr.mxu0 0.0
  %1099 = vmatpush1.msra.mxu0 %v1081
  %1100 = vmatprep.subr.mxu0 0.0
  %1101 = vmatpush1.msra.mxu0 %v1080
  %1102 = vmatprep.subr.mxu0 0.0
  %1103 = vmatpush1.msra.mxu0 %v1079
  %1104 = vmatprep.subr.mxu0 0.0
  %1105 = vmatpush1.msra.mxu0 %v1078
  %1106 = vmatprep.subr.mxu0 0.0
  %1107 = vmatpush1.msra.mxu0 %v1077
  %1108 = vmatprep.subr.mxu0 0.0
  %1109 = vmatpush1.msra.mxu0 %v1076
  %1110 = vmatprep.subr.mxu0 0.0
  %1111 = vmatpush1.msra.mxu0 %v1075
  %1112 = vmatprep.subr.mxu0 0.0
  %1113 = vmatpush1.msra.mxu0 %v1074
  %1114 = vmatprep.subr.mxu0 0.0
  %1115 = vmatpush1.msra.mxu0 %v1073
  %1116 = vmatprep.subr.mxu0 0.0
  %1117 = vmatpush1.msra.mxu0 %v1072
  %1118 = vmatprep.subr.mxu0 0.0
  %1119 = vmatpush1.msra.mxu0 %v1071
  %1120 = vmatprep.subr.mxu0 0.0
  %1121 = vmatpush1.msra.mxu0 %v1070
  %1122 = vmatprep.subr.mxu0 0.0
  %1123 = vmatpush1.msra.mxu0 %v1069
  %1124 = vmatprep.subr.mxu0 0.0
  %1125 = vmatpush1.msra.mxu0 %v1068
  %1126 = vmatprep.subr.mxu0 0.0
  %1127 = vmatpush1.msra.mxu0 %v1067
  %1128 = vmatprep.subr.mxu0 0.0
  %1129 = vmatpush1.msra.mxu0 %v1066
  %1130 = vmatprep.subr.mxu0 0.0
  %1131 = vmatpush2.msra.mxu0 %v1097
  %1132 = vmatprep.subr.mxu0 0.0
  %1133 = vmatpush2.msra.mxu0 %v1096
  %1134 = vmatprep.subr.mxu0 0.0
  %1135 = vmatpush2.msra.mxu0 %v1095
  %1136 = vmatprep.subr.mxu0 0.0
  %1137 = vmatpush2.msra.mxu0 %v1094
  %1138 = vmatprep.subr.mxu0 0.0
  %1139 = vmatpush2.msra.mxu0 %v1093
  %1140 = vmatprep.subr.mxu0 0.0
  %1141 = vmatpush2.msra.mxu0 %v1092
  %1142 = vmatprep.subr.mxu0 0.0
  %1143 = vmatpush2.msra.mxu0 %v1091
  %1144 = vmatprep.subr.mxu0 0.0
  %1145 = vmatpush2.msra.mxu0 %v1090
  %1146 = vmatprep.subr.mxu0 0.0
  %1147 = vmatpush2.msra.mxu0 %v1089
  %1148 = vmatprep.subr.mxu0 0.0
  %1149 = vmatpush2.msra.mxu0 %v1088
  %1150 = vmatprep.subr.mxu0 0.0
  %1151 = vmatpush2.msra.mxu0 %v1087
  %1152 = vmatprep.subr.mxu0 0.0
  %1153 = vmatpush2.msra.mxu0 %v1086
  %1154 = vmatprep.subr.mxu0 0.0
  %1155 = vmatpush2.msra.mxu0 %v1085
  %1156 = vmatprep.subr.mxu0 0.0
  %1157 = vmatpush2.msra.mxu0 %v1084
  %1158 = vmatprep.subr.mxu0 0.0
  %1159 = vmatpush2.msra.mxu0 %v1083
  %1160 = vmatprep.subr.mxu0 0.0
  %1161 = vmatpush2.msra.mxu0 %v1082
  %1162 = vmatprep.mubr.f32.mxu0 %v1065
  %1163 = vmatmul.mubr.f32.gmra.mxu0 %v1064
  %v1164 = vpop.f32.mrf.mxu0
  %v1165 = vadd.f32 0.0, %v1164
  %v1166 = vpop.f32.mrf.mxu0
  %1167 = vdwg.mxu0
  %vm1168 = vcmask 15360
  %v1169 = vsel %vm1168, %v1165, -inf
  %v1170 = vrot.slane %v1169, 4
  %v1171 = vmax.f32 %v1169, %v1170
  %v1172 = vrot.slane %v1171, 2
  %v1173 = vmax.f32 %v1171, %v1172
  %v1174 = vrot.slane %v1173, 1
  %v1175 = vmax.f32 %v1173, %v1174
  %v1176 = vsub.f32 %v1165, %v1175
  %v1177 = vmul.f32 %v1176, 1.442695
  %v1178 = vpow.pop %v1177
  %v1179 = vsel %vm1168, %v1178, 0.0
  %v1180 = vrot.slane %v1179, 4
  %v1181 = vadd.f32 %v1179, %v1180
  %v1182 = vrot.slane %v1181, 2
  %v1183 = vadd.f32 %v1181, %v1182
  %v1184 = vrot.slane %v1183, 1
  %v1185 = vadd.f32 %v1183, %v1184
  %v1186 = vrcp.pop %v1185
  %v1187 = vmul.f32 %v1178, %v1186
  %v1188 = vld [vmem:[%s3] sm:$0xff]
  %v1189 = vld [vmem:[%s3 + $0x8] sm:$0xff]
  %v1190 = vld [vmem:[%s3 + $0x10] sm:$0xff]
  %v1191 = vld [vmem:[%s3 + $0x18] sm:$0xff]
  %v1192 = vld [vmem:[%s3 + $0x20] sm:$0xff]
  %v1193 = vld [vmem:[%s3 + $0x28] sm:$0xff]
  %v1194 = vld [vmem:[%s3 + $0x30] sm:$0xff]
  %v1195 = vld [vmem:[%s3 + $0x38] sm:$0xff]
  %1197 = vset.pattern.permute.xlu0 0
  %1198 = vperm.xlu0 %1197, %v1188
  %v1199 = vpop.permute.xlu0 %1198
  %1202 = vset.pattern.permute.xlu0 0
  %1203 = vperm.xlu0 %1202, %v1189
  %v1204 = vpop.permute.xlu0 %1203
  %1207 = vset.pattern.permute.xlu0 0
  %1208 = vperm.xlu0 %1207, %v1190
  %v1209 = vpop.permute.xlu0 %1208
  %1212 = vset.pattern.permute.xlu0 0
  %1213 = vperm.xlu0 %1212, %v1191
  %v1214 = vpop.permute.xlu0 %1213
  %1217 = vset.pattern.permute.xlu0 0
  %1218 = vperm.xlu0 %1217, %v1192
  %v1219 = vpop.permute.xlu0 %1218
  %1222 = vset.pattern.permute.xlu0 0
  %1223 = vperm.xlu0 %1222, %v1193
  %v1224 = vpop.permute.xlu0 %1223
  %1227 = vset.pattern.permute.xlu0 0
  %1228 = vperm.xlu0 %1227, %v1194
  %v1229 = vpop.permute.xlu0 %1228
  %1232 = vset.pattern.permute.xlu0 0
  %1233 = vperm.xlu0 %1232, %v1195
  %v1234 = vpop.permute.xlu0 %1233
  %v1236 = vmul.f32 %v30, %v1199
  %v1237 = vmul.f32 %v31, %v1204
  %v1238 = vmul.f32 %v32, %v1209
  %v1239 = vmul.f32 %v33, %v1214
  %v1240 = vmul.f32 %v34, %v1219
  %v1241 = vmul.f32 %v35, %v1224
  %v1242 = vmul.f32 %v36, %v1229
  %v1243 = vmul.f32 %v37, %v1234
  %v1244 = vld [vmem:[%s4] sm:$0xff]
  %v1245 = vld [vmem:[%s4 + $0x8] sm:$0xff]
  %v1246 = vld [vmem:[%s4 + $0x10] sm:$0xff]
  %v1247 = vld [vmem:[%s4 + $0x18] sm:$0xff]
  %v1248 = vld [vmem:[%s4 + $0x20] sm:$0xff]
  %v1249 = vld [vmem:[%s4 + $0x28] sm:$0xff]
  %v1250 = vld [vmem:[%s4 + $0x30] sm:$0xff]
  %v1251 = vld [vmem:[%s4 + $0x38] sm:$0xff]
  %1253 = vset.pattern.permute.xlu0 0
  %1254 = vperm.xlu0 %1253, %v1244
  %v1255 = vpop.permute.xlu0 %1254
  %1258 = vset.pattern.permute.xlu0 0
  %1259 = vperm.xlu0 %1258, %v1245
  %v1260 = vpop.permute.xlu0 %1259
  %1263 = vset.pattern.permute.xlu0 0
  %1264 = vperm.xlu0 %1263, %v1246
  %v1265 = vpop.permute.xlu0 %1264
  %1268 = vset.pattern.permute.xlu0 0
  %1269 = vperm.xlu0 %1268, %v1247
  %v1270 = vpop.permute.xlu0 %1269
  %1273 = vset.pattern.permute.xlu0 0
  %1274 = vperm.xlu0 %1273, %v1248
  %v1275 = vpop.permute.xlu0 %1274
  %1278 = vset.pattern.permute.xlu0 0
  %1279 = vperm.xlu0 %1278, %v1249
  %v1280 = vpop.permute.xlu0 %1279
  %1283 = vset.pattern.permute.xlu0 0
  %1284 = vperm.xlu0 %1283, %v1250
  %v1285 = vpop.permute.xlu0 %1284
  %1288 = vset.pattern.permute.xlu0 0
  %1289 = vperm.xlu0 %1288, %v1251
  %v1290 = vpop.permute.xlu0 %1289
  %v1292 = vadd.f32 %v1236, %v1255
  %v1293 = vadd.f32 %v1237, %v1260
  %v1294 = vadd.f32 %v1238, %v1265
  %v1295 = vadd.f32 %v1239, %v1270
  %v1296 = vadd.f32 %v1240, %v1275
  %v1297 = vadd.f32 %v1241, %v1280
  %v1298 = vadd.f32 %v1242, %v1285
  %v1299 = vadd.f32 %v1243, %v1290
  %v1300 = vld [vmem:[%s6] sm:$0xff]
  %v1301 = vld [vmem:[%s6 + $0x8] sm:$0xff]
  %v1302 = vld [vmem:[%s6 + $0x10] sm:$0xff]
  %v1303 = vld [vmem:[%s6 + $0x18] sm:$0xff]
  %v1304 = vld [vmem:[%s6 + $0x20] sm:$0xff]
  %v1305 = vld [vmem:[%s6 + $0x28] sm:$0xff]
  %v1306 = vld [vmem:[%s6 + $0x30] sm:$0xff]
  %v1307 = vld [vmem:[%s6 + $0x38] sm:$0xff]
  %vm1308 = vcmask 64512
  %v1310 = vsel %vm1308, %v1300, 0
  %v1313 = vsel %vm1308, %v1301, 0
  %v1316 = vsel %vm1308, %v1302, 0
  %v1319 = vsel %vm1308, %v1303, 0
  %v1322 = vsel %vm1308, %v1304, 0
  %v1325 = vsel %vm1308, %v1305, 0
  %v1328 = vsel %vm1308, %v1306, 0
  %v1331 = vsel %vm1308, %v1307, 0
  %1333 = vmatprep.subr.mxu0 0.0
  %1334 = vmatpush1.msra.mxu0 0.0
  %1335 = vmatprep.subr.mxu0 0.0
  %1336 = vmatpush1.msra.mxu0 0.0
  %1337 = vmatprep.subr.mxu0 0.0
  %1338 = vmatpush1.msra.mxu0 0.0
  %1339 = vmatprep.subr.mxu0 0.0
  %1340 = vmatpush1.msra.mxu0 0.0
  %1341 = vmatprep.subr.mxu0 0.0
  %1342 = vmatpush1.msra.mxu0 0.0
  %1343 = vmatprep.subr.mxu0 0.0
  %1344 = vmatpush1.msra.mxu0 0.0
  %1345 = vmatprep.subr.mxu0 0.0
  %1346 = vmatpush1.msra.mxu0 0.0
  %1347 = vmatprep.subr.mxu0 0.0
  %1348 = vmatpush1.msra.mxu0 0.0
  %1349 = vmatprep.subr.mxu0 0.0
  %1350 = vmatpush1.msra.mxu0 0.0
  %1351 = vmatprep.subr.mxu0 0.0
  %1352 = vmatpush1.msra.mxu0 0.0
  %1353 = vmatprep.subr.mxu0 0.0
  %1354 = vmatpush1.msra.mxu0 0.0
  %1355 = vmatprep.subr.mxu0 0.0
  %1356 = vmatpush1.msra.mxu0 0.0
  %1357 = vmatprep.subr.mxu0 0.0
  %1358 = vmatpush1.msra.mxu0 0.0
  %1359 = vmatprep.subr.mxu0 0.0
  %1360 = vmatpush1.msra.mxu0 0.0
  %1361 = vmatprep.subr.mxu0 0.0
  %1362 = vmatpush1.msra.mxu0 0.0
  %1363 = vmatprep.subr.mxu0 0.0
  %1364 = vmatpush1.msra.mxu0 %v1187
  %1365 = vmatprep.subr.mxu0 0.0
  %1366 = vmatpush2.msra.mxu0 0.0
  %1367 = vmatprep.subr.mxu0 0.0
  %1368 = vmatpush2.msra.mxu0 0.0
  %1369 = vmatprep.subr.mxu0 0.0
  %1370 = vmatpush2.msra.mxu0 0.0
  %1371 = vmatprep.subr.mxu0 0.0
  %1372 = vmatpush2.msra.mxu0 0.0
  %1373 = vmatprep.subr.mxu0 0.0
  %1374 = vmatpush2.msra.mxu0 0.0
  %1375 = vmatprep.subr.mxu0 0.0
  %1376 = vmatpush2.msra.mxu0 0.0
  %1377 = vmatprep.subr.mxu0 0.0
  %1378 = vmatpush2.msra.mxu0 0.0
  %1379 = vmatprep.subr.mxu0 0.0
  %1380 = vmatpush2.msra.mxu0 0.0
  %1381 = vmatprep.subr.mxu0 0.0
  %1382 = vmatpush2.msra.mxu0 0.0
  %1383 = vmatprep.subr.mxu0 0.0
  %1384 = vmatpush2.msra.mxu0 0.0
  %1385 = vmatprep.subr.mxu0 0.0
  %1386 = vmatpush2.msra.mxu0 0.0
  %1387 = vmatprep.subr.mxu0 0.0
  %1388 = vmatpush2.msra.mxu0 0.0
  %1389 = vmatprep.subr.mxu0 0.0
  %1390 = vmatpush2.msra.mxu0 0.0
  %1391 = vmatprep.subr.mxu0 0.0
  %1392 = vmatpush2.msra.mxu0 0.0
  %1393 = vmatprep.subr.mxu0 0.0
  %1394 = vmatpush2.msra.mxu0 0.0
  %1395 = vmatprep.subr.mxu0 0.0
  %1396 = vmatpush2.msra.mxu0 0.0
  %1397 = vmatprep.mubr.f32.mxu0 0.0
  %1398 = vmatmul.mubr.f32.gmra.mxu0 %v1310
  %v1399 = vpop.f32.mrf.mxu0
  %v1400 = vadd.f32 0.0, %v1399
  %v1401 = vpop.f32.mrf.mxu0
  %1402 = vmatprep.mubr.f32.mxu0 0.0
  %1403 = vmatmul.mubr.f32.gmra.mxu0 %v1313
  %v1404 = vpop.f32.mrf.mxu0
  %v1405 = vadd.f32 0.0, %v1404
  %v1406 = vpop.f32.mrf.mxu0
  %1407 = vmatprep.mubr.f32.mxu0 0.0
  %1408 = vmatmul.mubr.f32.gmra.mxu0 %v1316
  %v1409 = vpop.f32.mrf.mxu0
  %v1410 = vadd.f32 0.0, %v1409
  %v1411 = vpop.f32.mrf.mxu0
  %1412 = vmatprep.mubr.f32.mxu0 0.0
  %1413 = vmatmul.mubr.f32.gmra.mxu0 %v1319
  %v1414 = vpop.f32.mrf.mxu0
  %v1415 = vadd.f32 0.0, %v1414
  %v1416 = vpop.f32.mrf.mxu0
  %1417 = vmatprep.mubr.f32.mxu0 0.0
  %1418 = vmatmul.mubr.f32.gmra.mxu0 %v1322
  %v1419 = vpop.f32.mrf.mxu0
  %v1420 = vadd.f32 0.0, %v1419
  %v1421 = vpop.f32.mrf.mxu0
  %1422 = vmatprep.mubr.f32.mxu0 0.0
  %1423 = vmatmul.mubr.f32.gmra.mxu0 %v1325
  %v1424 = vpop.f32.mrf.mxu0
  %v1425 = vadd.f32 0.0, %v1424
  %v1426 = vpop.f32.mrf.mxu0
  %1427 = vmatprep.mubr.f32.mxu0 0.0
  %1428 = vmatmul.mubr.f32.gmra.mxu0 %v1328
  %v1429 = vpop.f32.mrf.mxu0
  %v1430 = vadd.f32 0.0, %v1429
  %v1431 = vpop.f32.mrf.mxu0
  %1432 = vmatprep.mubr.f32.mxu0 0.0
  %1433 = vmatmul.mubr.f32.gmra.mxu0 %v1331
  %v1434 = vpop.f32.mrf.mxu0
  %v1435 = vadd.f32 0.0, %v1434
  %v1436 = vpop.f32.mrf.mxu0
  %1437 = vdwg.mxu0
  %v1438 = vld [vmem:[%s7] sm:$0xff]
  %v1439 = vmul.f32 %v1400, %v1292
  %v1440 = vmul.f32 %v1405, %v1293
  %v1441 = vmul.f32 %v1410, %v1294
  %v1442 = vmul.f32 %v1415, %v1295
  %v1443 = vmul.f32 %v1420, %v1296
  %v1444 = vmul.f32 %v1425, %v1297
  %v1445 = vmul.f32 %v1430, %v1298
  %v1446 = vmul.f32 %v1435, %v1299
  %vm1447 = vcmask 523264
  %v1449 = vsel %vm1447, %v1438, 0
  %1451 = vmatprep.subr.mxu0 0.0
  %1452 = vmatpush1.msra.mxu0 0.0
  %1453 = vmatprep.subr.mxu0 0.0
  %1454 = vmatpush1.msra.mxu0 0.0
  %1455 = vmatprep.subr.mxu0 0.0
  %1456 = vmatpush1.msra.mxu0 0.0
  %1457 = vmatprep.subr.mxu0 0.0
  %1458 = vmatpush1.msra.mxu0 0.0
  %1459 = vmatprep.subr.mxu0 0.0
  %1460 = vmatpush1.msra.mxu0 0.0
  %1461 = vmatprep.subr.mxu0 0.0
  %1462 = vmatpush1.msra.mxu0 0.0
  %1463 = vmatprep.subr.mxu0 0.0
  %1464 = vmatpush1.msra.mxu0 0.0
  %1465 = vmatprep.subr.mxu0 0.0
  %1466 = vmatpush1.msra.mxu0 0.0
  %1467 = vmatprep.subr.mxu0 0.0
  %1468 = vmatpush1.msra.mxu0 %v1446
  %1469 = vmatprep.subr.mxu0 0.0
  %1470 = vmatpush1.msra.mxu0 %v1445
  %1471 = vmatprep.subr.mxu0 0.0
  %1472 = vmatpush1.msra.mxu0 %v1444
  %1473 = vmatprep.subr.mxu0 0.0
  %1474 = vmatpush1.msra.mxu0 %v1443
  %1475 = vmatprep.subr.mxu0 0.0
  %1476 = vmatpush1.msra.mxu0 %v1442
  %1477 = vmatprep.subr.mxu0 0.0
  %1478 = vmatpush1.msra.mxu0 %v1441
  %1479 = vmatprep.subr.mxu0 0.0
  %1480 = vmatpush1.msra.mxu0 %v1440
  %1481 = vmatprep.subr.mxu0 0.0
  %1482 = vmatpush1.msra.mxu0 %v1439
  %1483 = vmatprep.subr.mxu0 0.0
  %1484 = vmatpush2.msra.mxu0 0.0
  %1485 = vmatprep.subr.mxu0 0.0
  %1486 = vmatpush2.msra.mxu0 0.0
  %1487 = vmatprep.subr.mxu0 0.0
  %1488 = vmatpush2.msra.mxu0 0.0
  %1489 = vmatprep.subr.mxu0 0.0
  %1490 = vmatpush2.msra.mxu0 0.0
  %1491 = vmatprep.subr.mxu0 0.0
  %1492 = vmatpush2.msra.mxu0 0.0
  %1493 = vmatprep.subr.mxu0 0.0
  %1494 = vmatpush2.msra.mxu0 0.0
  %1495 = vmatprep.subr.mxu0 0.0
  %1496 = vmatpush2.msra.mxu0 0.0
  %1497 = vmatprep.subr.mxu0 0.0
  %1498 = vmatpush2.msra.mxu0 0.0
  %1499 = vmatprep.subr.mxu0 0.0
  %1500 = vmatpush2.msra.mxu0 0.0
  %1501 = vmatprep.subr.mxu0 0.0
  %1502 = vmatpush2.msra.mxu0 0.0
  %1503 = vmatprep.subr.mxu0 0.0
  %1504 = vmatpush2.msra.mxu0 0.0
  %1505 = vmatprep.subr.mxu0 0.0
  %1506 = vmatpush2.msra.mxu0 0.0
  %1507 = vmatprep.subr.mxu0 0.0
  %1508 = vmatpush2.msra.mxu0 0.0
  %1509 = vmatprep.subr.mxu0 0.0
  %1510 = vmatpush2.msra.mxu0 0.0
  %1511 = vmatprep.subr.mxu0 0.0
  %1512 = vmatpush2.msra.mxu0 0.0
  %1513 = vmatprep.subr.mxu0 0.0
  %1514 = vmatpush2.msra.mxu0 0.0
  %1515 = vmatprep.mubr.f32.mxu0 0.0
  %1516 = vmatmul.mubr.f32.gmra.mxu0 %v1449
  %v1517 = vpop.f32.mrf.mxu0
  %v1518 = vadd.f32 0.0, %v1517
  %v1519 = vpop.f32.mrf.mxu0
  %1520 = vdwg.mxu0
  %1521 = vst.msk [vmem:[%s8] sm:$0xff] %vm1168, %v1518
  %1522 = vst.msk [vmem:[%s8 + $0x8] sm:$0xff] %vm1168, %v1187
  // Predicated region
  $region34: #{tpu_custom_call.1} parent=0 // pred_check
    _
  $region35: #{tpu_custom_call.1} parent=0 // pred_check_branch
    %1524 = sbr.rel (0) target = $region37
  $region36: #{tpu_custom_call.1} parent=0 // pred_region
    _
  $region37: #{tpu_custom_call.1} parent=0 // pred_fallthru
    _
  // Predicated region
  $region38: #{tpu_custom_call.1} parent=0 // pred_check
    _
  $region39: #{tpu_custom_call.1} parent=0 // pred_check_branch
    %1526 = sbr.rel (0) target = $region41
  $region40: #{tpu_custom_call.1} parent=0 // pred_region
    _
  $region41: #{tpu_custom_call.1} parent=0 // pred_fallthru
    _

</llo_original>
